<compile_context>
chip_gen: v5e
topology: v5e:2x2
jax: 0.10.0
libtpu: 0.0.40
codegen_flags: <defaults>
</compile_context>

<pallas_src>
import jax
import jax.numpy as jnp
from jax import lax
from jax.experimental import pallas as pl
from jax.experimental.pallas import tpu as pltpu

KH = KW = 3  # 3x3 conv


def _round_up(x, m):
    return ((x + m - 1) // m) * m


def make_kernel(H, W, HW, HWo):
    """Fused conv(3x3, SAME) + ReLU + global-mean-pool + linear; one image/step."""
    halo = W + 1
    inv_hw = 1.0 / float(HW)

    def kernel(x_ref, wf_ref, b_ref, rw_ref, rb_ref, act_ref, out_ref):
        # x_ref  : (Cin, L_pad)   one image, flattened HW with (W+1)-lane zero halo
        # wf_ref : (9, Cout, Cin) per-tap conv weights (tap index = kh*3 + kw)
        # b_ref  : (Cout, 1)      conv bias
        # rw_ref : (Cout, 1)      regressor weight
        # rb_ref : (1, 1)         regressor bias
        # act_ref: (Cout, HWo)    saved activations (lane-dense, HW padded to 128)
        # out_ref: (8, 128)       regressor output, scalar broadcast (aligned store)
        cout = act_ref.shape[0]

        # Lane-index masks, computed once (VPU work; kernel is HBM-bound).
        idx = lax.broadcasted_iota(jnp.int32, (1, HWo), 1)
        col = idx % W
        not_left = col != 0            # tap reads column w-1: invalid at w == 0
        not_right = col != (W - 1)     # tap reads column w+1: invalid at w == W-1
        valid = idx < HW               # exclude padded lanes from the pool

        # 3x3 conv as 9 shifted lane-windows x (Cout, Cin) matmuls, f32 acc.
        # Out-of-image taps in the H direction read the zero halo for free;
        # only W-edge wraparound needs masking.
        acc = jnp.zeros((cout, HWo), jnp.float32)
        for kh in range(KH):
            for kw in range(KW):
                dh, dw = kh - 1, kw - 1
                start = halo + dh * W + dw             # static, >= 0
                win = x_ref[:, pl.ds(start, HWo)]      # (Cin, HWo)
                if dw == -1:
                    win = jnp.where(not_left, win, 0.0)
                elif dw == 1:
                    win = jnp.where(not_right, win, 0.0)
                acc = acc + jnp.dot(wf_ref[kh * KW + kw], win,
                                    preferred_element_type=jnp.float32)

        act = jnp.maximum(acc + b_ref[...], 0.0)       # bias + ReLU
        act_ref[...] = act.astype(act_ref.dtype)

        # Regressor: reduce first (lane sum over valid pixels), then weight.
        pooled = jnp.sum(jnp.where(valid, act, 0.0), axis=1, keepdims=True)  # (Cout,1)
        total = jnp.sum(pooled * rw_ref[...], axis=0, keepdims=True)          # (1,1)
        val = total * inv_hw + rb_ref[...]                                    # (1,1)
        out_ref[...] = jnp.broadcast_to(val, out_ref.shape).astype(out_ref.dtype)

    return kernel


def mangagradcam_forward(x_nchw, conv_w_oihw, conv_b, reg_w, reg_b):
    """Runs the fused forward pass. Returns (out (N,1), activations NCHW)."""
    N, Cin, H, W = x_nchw.shape
    Cout = conv_w_oihw.shape[0]
    HW = H * W
    HWo = _round_up(HW, 128)                 # lane-dense act blocks
    halo = W + 1
    L_pad = _round_up(HWo + 2 * halo, 128)   # haloed, 128-aligned input lanes

    # --- layout plumbing: reshape + zero halo only (no im2col, no transposes)
    x_flat = x_nchw.astype(jnp.float32).reshape(N, Cin, HW)
    x_ext = jnp.pad(x_flat, ((0, 0), (0, 0), (halo, L_pad - HW - halo)))

    wf = jnp.transpose(conv_w_oihw.reshape(Cout, Cin, KH * KW),
                       (2, 0, 1)).astype(jnp.float32)        # (9, Cout, Cin)
    b = conv_b.reshape(Cout, 1).astype(jnp.float32)
    rw = reg_w.reshape(Cout, 1).astype(jnp.float32)
    rb = reg_b.reshape(1, 1).astype(jnp.float32)

    flops = N * (2 * Cout * Cin * KH * KW * HW + 4 * Cout * HW)
    bytes_accessed = 4 * (x_ext.size + wf.size + b.size + rw.size + rb.size
                          + N * Cout * HWo + N * 8 * 128)

    act_p, out_p = pl.pallas_call(
        make_kernel(H, W, HW, HWo),
        out_shape=(
            jax.ShapeDtypeStruct((N, Cout, HWo), jnp.float32),
            jax.ShapeDtypeStruct((N * 8, 128), jnp.float32),
        ),
        grid_spec=pltpu.PrefetchScalarGridSpec(
            num_scalar_prefetch=0,
            grid=(N,),                                       # one image per step
            in_specs=[
                pl.BlockSpec((None, Cin, L_pad), lambda n: (n, 0, 0)),
                pl.BlockSpec((KH * KW, Cout, Cin), lambda n: (0, 0, 0)),
                pl.BlockSpec((Cout, 1), lambda n: (0, 0)),
                pl.BlockSpec((Cout, 1), lambda n: (0, 0)),
                pl.BlockSpec((1, 1), lambda n: (0, 0)),
            ],
            out_specs=[
                pl.BlockSpec((None, Cout, HWo), lambda n: (n, 0, 0)),
                pl.BlockSpec((8, 128), lambda n: (n, 0)),
            ],
        ),
        compiler_params=pltpu.CompilerParams(
            dimension_semantics=("parallel",),               # v7x megacore split
        ),
        cost_estimate=pl.CostEstimate(
            flops=flops, transcendentals=0, bytes_accessed=bytes_accessed),
    )(x_ext, wf, b, rw, rb)

    out = out_p.reshape(N, 8, 128)[:, 0, 0].reshape(N, 1)
    act_nchw = act_p[:, :, :HW].reshape(N, Cout, H, W)       # already NCHW order
    return out, act_nchw


def reference_forward(x_nchw, conv_w_oihw, conv_b, reg_w, reg_b):
    """Pure-JAX reference matching PyTorch semantics (NCHW)."""
    y = jax.lax.conv_general_dilated(
        x_nchw, conv_w_oihw, window_strides=(1, 1), padding="SAME",
        dimension_numbers=("NCHW", "OIHW", "NCHW"),
    )
    y = y + conv_b[None, :, None, None]
    act = jnp.maximum(y, 0.0)
    pooled = jnp.mean(act, axis=(2, 3))                      # (N, Cout)
    out = pooled @ reg_w.reshape(-1, 1) + reg_b.reshape(1, 1)
    return out, act


if __name__ == "__main__":
    key = jax.random.PRNGKey(0)
    k_x, k_w, k_b, k_rw, k_rb = jax.random.split(key, 5)

    N, Cin, H, W = 2, 4, 16, 16
    Cout = 8

    x = jax.random.normal(k_x, (N, Cin, H, W), dtype=jnp.float32)
    conv_w = 0.1 * jax.random.normal(k_w, (Cout, Cin, KH, KW), dtype=jnp.float32)
    conv_b = 0.1 * jax.random.normal(k_b, (Cout,), dtype=jnp.float32)
    reg_w = 0.1 * jax.random.normal(k_rw, (Cout,), dtype=jnp.float32)
    reg_b = 0.1 * jax.random.normal(k_rb, (1,), dtype=jnp.float32)

    out, act = mangagradcam_forward(x, conv_w, conv_b, reg_w, reg_b)
    out = jax.block_until_ready(out)
    act = jax.block_until_ready(act)

    ref_out, ref_act = reference_forward(x, conv_w, conv_b, reg_w, reg_b)

    assert jnp.allclose(out, ref_out, atol=5e-4, rtol=5e-4), "regressor output mismatch"
    assert jnp.allclose(act, ref_act, atol=5e-4, rtol=5e-4), "activations mismatch"

    print("KERNEL_OK")
</pallas_src>

<mosaic_0001>
module attributes {stable_mosaic.version = 11 : i64} {
  func.func @kernel(%arg0: i32, %arg1: memref<1x4x384xf32, #tpu.memory_space<vmem>>, %arg2: memref<9x8x4xf32, #tpu.memory_space<vmem>>, %arg3: memref<8x1xf32, #tpu.memory_space<vmem>>, %arg4: memref<8x1xf32, #tpu.memory_space<vmem>>, %arg5: memref<1x1xf32, #tpu.memory_space<vmem>>, %arg6: memref<1x8x256xf32, #tpu.memory_space<vmem>>, %arg7: memref<8x128xf32, #tpu.memory_space<vmem>>) attributes {dimension_semantics = [#tpu.dimension_semantics<parallel>], iteration_bounds = array<i64: 2>, scalar_prefetch = 0 : i64, scratch_operands = 0 : i64, tpu.core_type = #tpu.core_type<tc>, window_params = [{transform_indices = @transform_0, window_bounds = array<i64: 1, 4, 384>}, {pipeline_mode = #tpu.pipeline_mode<synchronous>, transform_indices = @transform_1, window_bounds = array<i64: 9, 8, 4>}, {pipeline_mode = #tpu.pipeline_mode<synchronous>, transform_indices = @transform_2, window_bounds = array<i64: 8, 1>}, {pipeline_mode = #tpu.pipeline_mode<synchronous>, transform_indices = @transform_3, window_bounds = array<i64: 8, 1>}, {pipeline_mode = #tpu.pipeline_mode<synchronous>, transform_indices = @transform_4, window_bounds = array<i64: 1, 1>}, {transform_indices = @transform_5, window_bounds = array<i64: 1, 8, 256>}, {transform_indices = @transform_6, window_bounds = array<i64: 8, 128>}]} {
    %0 = tpu.iota {dimensions = array<i32: 1>} : vector<1x256xi32>
    %c16_i32 = arith.constant 16 : i32
    %c0_i32 = arith.constant 0 : i32
    %1 = arith.cmpi eq, %c16_i32, %c0_i32 : i32
    %c1_i32 = arith.constant 1 : i32
    %2 = arith.select %1, %c1_i32, %c16_i32 : i32
    %3 = vector.broadcast %2 : i32 to vector<1x256xi32>
    %4 = arith.remsi %0, %3 : vector<1x256xi32>
    %c0_i32_0 = arith.constant 0 : i32
    %5 = vector.broadcast %c0_i32_0 : i32 to vector<1x256xi32>
    %6 = arith.cmpi ne, %4, %5 : vector<1x256xi32>
    %c0_i32_1 = arith.constant 0 : i32
    %7 = vector.broadcast %c0_i32_1 : i32 to vector<1x256xi32>
    %8 = arith.cmpi slt, %4, %7 : vector<1x256xi32>
    %c0_i32_2 = arith.constant 0 : i32
    %9 = arith.cmpi slt, %2, %c0_i32_2 : i32
    %10 = vector.broadcast %9 : i1 to vector<1x256xi1>
    %11 = vector.broadcast %10 : vector<1x256xi1> to vector<1x256xi1>
    %12 = arith.xori %8, %11 : vector<1x256xi1>
    %13 = arith.andi %12, %6 : vector<1x256xi1>
    %14 = vector.broadcast %2 : i32 to vector<1x256xi32>
    %15 = arith.addi %4, %14 : vector<1x256xi32>
    %16 = arith.select %13, %15, %4 : vector<1x256xi1>, vector<1x256xi32>
    %c0_i32_3 = arith.constant 0 : i32
    %17 = vector.broadcast %c0_i32_3 : i32 to vector<1x256xi32>
    %18 = arith.cmpi ne, %16, %17 : vector<1x256xi32>
    %c15_i32 = arith.constant 15 : i32
    %19 = vector.broadcast %c15_i32 : i32 to vector<1x256xi32>
    %20 = arith.cmpi ne, %16, %19 : vector<1x256xi32>
    %c256_i32 = arith.constant 256 : i32
    %21 = vector.broadcast %c256_i32 : i32 to vector<1x256xi32>
    %22 = arith.cmpi slt, %0, %21 : vector<1x256xi32>
    %cst = arith.constant 0.000000e+00 : f32
    %23 = vector.broadcast %cst : f32 to vector<8x256xf32>
    %c0 = arith.constant 0 : index
    %c0_4 = arith.constant 0 : index
    %c0_5 = arith.constant 0 : index
    %24 = vector.load %arg1[%c0, %c0_4, %c0_5] : memref<1x4x384xf32, #tpu.memory_space<vmem>>, vector<1x4x256xf32>
    %25 = vector.shape_cast %24 : vector<1x4x256xf32> to vector<4x256xf32>
    %cst_6 = arith.constant 0.000000e+00 : f32
    %26 = vector.shape_cast %18 : vector<1x256xi1> to vector<1x256xi1>
    %27 = vector.broadcast %26 : vector<1x256xi1> to vector<4x256xi1>
    %28 = vector.broadcast %cst_6 : f32 to vector<4x256xf32>
    %29 = arith.select %27, %25, %28 : vector<4x256xi1>, vector<4x256xf32>
    %c0_7 = arith.constant 0 : index
    %c0_8 = arith.constant 0 : index
    %c0_9 = arith.constant 0 : index
    %30 = vector.load %arg2[%c0_7, %c0_8, %c0_9] : memref<9x8x4xf32, #tpu.memory_space<vmem>>, vector<1x8x4xf32>
    %31 = vector.shape_cast %30 : vector<1x8x4xf32> to vector<8x4xf32>
    %cst_10 = arith.constant dense<0.000000e+00> : vector<8x256xf32>
    %32 = tpu.matmul %31, %29, %cst_10 {dimension_numbers = #tpu.dot_dimension_numbers<[1], [0], [0], [1], [0, 0, 1, 1], [], []>} : vector<8x4xf32>, vector<4x256xf32>, vector<8x256xf32> -> vector<8x256xf32>
    %33 = arith.addf %23, %32 : vector<8x256xf32>
    %c0_11 = arith.constant 0 : index
    %c0_12 = arith.constant 0 : index
    %c1 = arith.constant 1 : index
    %34 = vector.load %arg1[%c0_11, %c0_12, %c1] : memref<1x4x384xf32, #tpu.memory_space<vmem>>, vector<1x4x256xf32>
    %35 = vector.shape_cast %34 : vector<1x4x256xf32> to vector<4x256xf32>
    %c1_13 = arith.constant 1 : index
    %c0_14 = arith.constant 0 : index
    %c0_15 = arith.constant 0 : index
    %36 = vector.load %arg2[%c1_13, %c0_14, %c0_15] : memref<9x8x4xf32, #tpu.memory_space<vmem>>, vector<1x8x4xf32>
    %37 = vector.shape_cast %36 : vector<1x8x4xf32> to vector<8x4xf32>
    %cst_16 = arith.constant dense<0.000000e+00> : vector<8x256xf32>
    %38 = tpu.matmul %37, %35, %cst_16 {dimension_numbers = #tpu.dot_dimension_numbers<[1], [0], [0], [1], [0, 0, 1, 1], [], []>} : vector<8x4xf32>, vector<4x256xf32>, vector<8x256xf32> -> vector<8x256xf32>
    %39 = arith.addf %33, %38 : vector<8x256xf32>
    %c0_17 = arith.constant 0 : index
    %c0_18 = arith.constant 0 : index
    %c2 = arith.constant 2 : index
    %40 = vector.load %arg1[%c0_17, %c0_18, %c2] : memref<1x4x384xf32, #tpu.memory_space<vmem>>, vector<1x4x256xf32>
    %41 = vector.shape_cast %40 : vector<1x4x256xf32> to vector<4x256xf32>
    %cst_19 = arith.constant 0.000000e+00 : f32
    %42 = vector.shape_cast %20 : vector<1x256xi1> to vector<1x256xi1>
    %43 = vector.broadcast %42 : vector<1x256xi1> to vector<4x256xi1>
    %44 = vector.broadcast %cst_19 : f32 to vector<4x256xf32>
    %45 = arith.select %43, %41, %44 : vector<4x256xi1>, vector<4x256xf32>
    %c2_20 = arith.constant 2 : index
    %c0_21 = arith.constant 0 : index
    %c0_22 = arith.constant 0 : index
    %46 = vector.load %arg2[%c2_20, %c0_21, %c0_22] : memref<9x8x4xf32, #tpu.memory_space<vmem>>, vector<1x8x4xf32>
    %47 = vector.shape_cast %46 : vector<1x8x4xf32> to vector<8x4xf32>
    %cst_23 = arith.constant dense<0.000000e+00> : vector<8x256xf32>
    %48 = tpu.matmul %47, %45, %cst_23 {dimension_numbers = #tpu.dot_dimension_numbers<[1], [0], [0], [1], [0, 0, 1, 1], [], []>} : vector<8x4xf32>, vector<4x256xf32>, vector<8x256xf32> -> vector<8x256xf32>
    %49 = arith.addf %39, %48 : vector<8x256xf32>
    %c0_24 = arith.constant 0 : index
    %c0_25 = arith.constant 0 : index
    %c16 = arith.constant 16 : index
    %50 = vector.load %arg1[%c0_24, %c0_25, %c16] : memref<1x4x384xf32, #tpu.memory_space<vmem>>, vector<1x4x256xf32>
    %51 = vector.shape_cast %50 : vector<1x4x256xf32> to vector<4x256xf32>
    %cst_26 = arith.constant 0.000000e+00 : f32
    %52 = vector.shape_cast %18 : vector<1x256xi1> to vector<1x256xi1>
    %53 = vector.broadcast %52 : vector<1x256xi1> to vector<4x256xi1>
    %54 = vector.broadcast %cst_26 : f32 to vector<4x256xf32>
    %55 = arith.select %53, %51, %54 : vector<4x256xi1>, vector<4x256xf32>
    %c3 = arith.constant 3 : index
    %c0_27 = arith.constant 0 : index
    %c0_28 = arith.constant 0 : index
    %56 = vector.load %arg2[%c3, %c0_27, %c0_28] : memref<9x8x4xf32, #tpu.memory_space<vmem>>, vector<1x8x4xf32>
    %57 = vector.shape_cast %56 : vector<1x8x4xf32> to vector<8x4xf32>
    %cst_29 = arith.constant dense<0.000000e+00> : vector<8x256xf32>
    %58 = tpu.matmul %57, %55, %cst_29 {dimension_numbers = #tpu.dot_dimension_numbers<[1], [0], [0], [1], [0, 0, 1, 1], [], []>} : vector<8x4xf32>, vector<4x256xf32>, vector<8x256xf32> -> vector<8x256xf32>
    %59 = arith.addf %49, %58 : vector<8x256xf32>
    %c0_30 = arith.constant 0 : index
    %c0_31 = arith.constant 0 : index
    %c17 = arith.constant 17 : index
    %60 = vector.load %arg1[%c0_30, %c0_31, %c17] : memref<1x4x384xf32, #tpu.memory_space<vmem>>, vector<1x4x256xf32>
    %61 = vector.shape_cast %60 : vector<1x4x256xf32> to vector<4x256xf32>
    %c4 = arith.constant 4 : index
    %c0_32 = arith.constant 0 : index
    %c0_33 = arith.constant 0 : index
    %62 = vector.load %arg2[%c4, %c0_32, %c0_33] : memref<9x8x4xf32, #tpu.memory_space<vmem>>, vector<1x8x4xf32>
    %63 = vector.shape_cast %62 : vector<1x8x4xf32> to vector<8x4xf32>
    %cst_34 = arith.constant dense<0.000000e+00> : vector<8x256xf32>
    %64 = tpu.matmul %63, %61, %cst_34 {dimension_numbers = #tpu.dot_dimension_numbers<[1], [0], [0], [1], [0, 0, 1, 1], [], []>} : vector<8x4xf32>, vector<4x256xf32>, vector<8x256xf32> -> vector<8x256xf32>
    %65 = arith.addf %59, %64 : vector<8x256xf32>
    %c0_35 = arith.constant 0 : index
    %c0_36 = arith.constant 0 : index
    %c18 = arith.constant 18 : index
    %66 = vector.load %arg1[%c0_35, %c0_36, %c18] : memref<1x4x384xf32, #tpu.memory_space<vmem>>, vector<1x4x256xf32>
    %67 = vector.shape_cast %66 : vector<1x4x256xf32> to vector<4x256xf32>
    %cst_37 = arith.constant 0.000000e+00 : f32
    %68 = vector.shape_cast %20 : vector<1x256xi1> to vector<1x256xi1>
    %69 = vector.broadcast %68 : vector<1x256xi1> to vector<4x256xi1>
    %70 = vector.broadcast %cst_37 : f32 to vector<4x256xf32>
    %71 = arith.select %69, %67, %70 : vector<4x256xi1>, vector<4x256xf32>
    %c5 = arith.constant 5 : index
    %c0_38 = arith.constant 0 : index
    %c0_39 = arith.constant 0 : index
    %72 = vector.load %arg2[%c5, %c0_38, %c0_39] : memref<9x8x4xf32, #tpu.memory_space<vmem>>, vector<1x8x4xf32>
    %73 = vector.shape_cast %72 : vector<1x8x4xf32> to vector<8x4xf32>
    %cst_40 = arith.constant dense<0.000000e+00> : vector<8x256xf32>
    %74 = tpu.matmul %73, %71, %cst_40 {dimension_numbers = #tpu.dot_dimension_numbers<[1], [0], [0], [1], [0, 0, 1, 1], [], []>} : vector<8x4xf32>, vector<4x256xf32>, vector<8x256xf32> -> vector<8x256xf32>
    %75 = arith.addf %65, %74 : vector<8x256xf32>
    %c0_41 = arith.constant 0 : index
    %c0_42 = arith.constant 0 : index
    %c32 = arith.constant 32 : index
    %76 = vector.load %arg1[%c0_41, %c0_42, %c32] : memref<1x4x384xf32, #tpu.memory_space<vmem>>, vector<1x4x256xf32>
    %77 = vector.shape_cast %76 : vector<1x4x256xf32> to vector<4x256xf32>
    %cst_43 = arith.constant 0.000000e+00 : f32
    %78 = vector.shape_cast %18 : vector<1x256xi1> to vector<1x256xi1>
    %79 = vector.broadcast %78 : vector<1x256xi1> to vector<4x256xi1>
    %80 = vector.broadcast %cst_43 : f32 to vector<4x256xf32>
    %81 = arith.select %79, %77, %80 : vector<4x256xi1>, vector<4x256xf32>
    %c6 = arith.constant 6 : index
    %c0_44 = arith.constant 0 : index
    %c0_45 = arith.constant 0 : index
    %82 = vector.load %arg2[%c6, %c0_44, %c0_45] : memref<9x8x4xf32, #tpu.memory_space<vmem>>, vector<1x8x4xf32>
    %83 = vector.shape_cast %82 : vector<1x8x4xf32> to vector<8x4xf32>
    %cst_46 = arith.constant dense<0.000000e+00> : vector<8x256xf32>
    %84 = tpu.matmul %83, %81, %cst_46 {dimension_numbers = #tpu.dot_dimension_numbers<[1], [0], [0], [1], [0, 0, 1, 1], [], []>} : vector<8x4xf32>, vector<4x256xf32>, vector<8x256xf32> -> vector<8x256xf32>
    %85 = arith.addf %75, %84 : vector<8x256xf32>
    %c0_47 = arith.constant 0 : index
    %c0_48 = arith.constant 0 : index
    %c33 = arith.constant 33 : index
    %86 = vector.load %arg1[%c0_47, %c0_48, %c33] : memref<1x4x384xf32, #tpu.memory_space<vmem>>, vector<1x4x256xf32>
    %87 = vector.shape_cast %86 : vector<1x4x256xf32> to vector<4x256xf32>
    %c7 = arith.constant 7 : index
    %c0_49 = arith.constant 0 : index
    %c0_50 = arith.constant 0 : index
    %88 = vector.load %arg2[%c7, %c0_49, %c0_50] : memref<9x8x4xf32, #tpu.memory_space<vmem>>, vector<1x8x4xf32>
    %89 = vector.shape_cast %88 : vector<1x8x4xf32> to vector<8x4xf32>
    %cst_51 = arith.constant dense<0.000000e+00> : vector<8x256xf32>
    %90 = tpu.matmul %89, %87, %cst_51 {dimension_numbers = #tpu.dot_dimension_numbers<[1], [0], [0], [1], [0, 0, 1, 1], [], []>} : vector<8x4xf32>, vector<4x256xf32>, vector<8x256xf32> -> vector<8x256xf32>
    %91 = arith.addf %85, %90 : vector<8x256xf32>
    %c0_52 = arith.constant 0 : index
    %c0_53 = arith.constant 0 : index
    %c34 = arith.constant 34 : index
    %92 = vector.load %arg1[%c0_52, %c0_53, %c34] : memref<1x4x384xf32, #tpu.memory_space<vmem>>, vector<1x4x256xf32>
    %93 = vector.shape_cast %92 : vector<1x4x256xf32> to vector<4x256xf32>
    %cst_54 = arith.constant 0.000000e+00 : f32
    %94 = vector.shape_cast %20 : vector<1x256xi1> to vector<1x256xi1>
    %95 = vector.broadcast %94 : vector<1x256xi1> to vector<4x256xi1>
    %96 = vector.broadcast %cst_54 : f32 to vector<4x256xf32>
    %97 = arith.select %95, %93, %96 : vector<4x256xi1>, vector<4x256xf32>
    %c8 = arith.constant 8 : index
    %c0_55 = arith.constant 0 : index
    %c0_56 = arith.constant 0 : index
    %98 = vector.load %arg2[%c8, %c0_55, %c0_56] : memref<9x8x4xf32, #tpu.memory_space<vmem>>, vector<1x8x4xf32>
    %99 = vector.shape_cast %98 : vector<1x8x4xf32> to vector<8x4xf32>
    %cst_57 = arith.constant dense<0.000000e+00> : vector<8x256xf32>
    %100 = tpu.matmul %99, %97, %cst_57 {dimension_numbers = #tpu.dot_dimension_numbers<[1], [0], [0], [1], [0, 0, 1, 1], [], []>} : vector<8x4xf32>, vector<4x256xf32>, vector<8x256xf32> -> vector<8x256xf32>
    %101 = arith.addf %91, %100 : vector<8x256xf32>
    %c0_58 = arith.constant 0 : index
    %c0_59 = arith.constant 0 : index
    %102 = vector.load %arg3[%c0_58, %c0_59] : memref<8x1xf32, #tpu.memory_space<vmem>>, vector<8x1xf32>
    %103 = vector.broadcast %102 : vector<8x1xf32> to vector<8x256xf32>
    %104 = arith.addf %101, %103 : vector<8x256xf32>
    %cst_60 = arith.constant 0.000000e+00 : f32
    %105 = vector.broadcast %cst_60 : f32 to vector<8x256xf32>
    %106 = arith.maximumf %104, %105 : vector<8x256xf32>
    %c0_61 = arith.constant 0 : index
    %c0_62 = arith.constant 0 : index
    %c0_63 = arith.constant 0 : index
    %107 = vector.load %arg6[%c0_61, %c0_62, %c0_63] : memref<1x8x256xf32, #tpu.memory_space<vmem>>, vector<1x8x256xf32>
    %108 = vector.shape_cast %107 : vector<1x8x256xf32> to vector<8x256xf32>
    %109 = vector.shape_cast %106 : vector<8x256xf32> to vector<1x8x256xf32>
    tpu.vector_store %arg6[%c0_61, %c0_62, %c0_63], %109 {strides = array<i32>} : memref<1x8x256xf32, #tpu.memory_space<vmem>>, vector<1x8x256xf32>,
    %cst_64 = arith.constant 0.000000e+00 : f32
    %110 = vector.shape_cast %22 : vector<1x256xi1> to vector<1x256xi1>
    %111 = vector.broadcast %110 : vector<1x256xi1> to vector<8x256xi1>
    %112 = vector.broadcast %cst_64 : f32 to vector<8x256xf32>
    %113 = arith.select %111, %106, %112 : vector<8x256xi1>, vector<8x256xf32>
    %cst_65 = arith.constant dense<0.000000e+00> : vector<8xf32>
    %114 = vector.multi_reduction <add>, %113, %cst_65 [1] : vector<8x256xf32> to vector<8xf32>
    %115 = vector.shape_cast %114 : vector<8xf32> to vector<8x1xf32>
    %c0_66 = arith.constant 0 : index
    %c0_67 = arith.constant 0 : index
    %116 = vector.load %arg4[%c0_66, %c0_67] : memref<8x1xf32, #tpu.memory_space<vmem>>, vector<8x1xf32>
    %117 = arith.mulf %115, %116 : vector<8x1xf32>
    %cst_68 = arith.constant dense<0.000000e+00> : vector<1xf32>
    %118 = vector.multi_reduction <add>, %117, %cst_68 [0] : vector<8x1xf32> to vector<1xf32>
    %119 = vector.shape_cast %118 : vector<1xf32> to vector<1x1xf32>
    %cst_69 = arith.constant 3.906250e-03 : f32
    %120 = vector.broadcast %cst_69 : f32 to vector<1x1xf32>
    %121 = arith.mulf %119, %120 : vector<1x1xf32>
    %c0_70 = arith.constant 0 : index
    %c0_71 = arith.constant 0 : index
    %122 = vector.load %arg5[%c0_70, %c0_71] : memref<1x1xf32, #tpu.memory_space<vmem>>, vector<1x1xf32>
    %123 = arith.addf %121, %122 : vector<1x1xf32>
    %124 = vector.shape_cast %123 : vector<1x1xf32> to vector<1x1xf32>
    %125 = vector.broadcast %124 : vector<1x1xf32> to vector<8x128xf32>
    %c0_72 = arith.constant 0 : index
    %c0_73 = arith.constant 0 : index
    %126 = vector.load %arg7[%c0_72, %c0_73] : memref<8x128xf32, #tpu.memory_space<vmem>>, vector<8x128xf32>
    tpu.vector_store %arg7[%c0_72, %c0_73], %125 {strides = array<i32>} : memref<8x128xf32, #tpu.memory_space<vmem>>, vector<8x128xf32>,
    return
  }
  func.func @transform_0(%arg0: i32) -> (i32, i32, i32) {
    %c0_i32 = arith.constant 0 : i32
    %c0_i32_0 = arith.constant 0 : i32
    %c0_i32_1 = arith.constant 0 : i32
    return %arg0, %c0_i32, %c0_i32_0 : i32, i32, i32
  }
  func.func @transform_1(%arg0: i32) -> (i32, i32, i32) {
    %c0_i32 = arith.constant 0 : i32
    %c0_i32_0 = arith.constant 0 : i32
    %c0_i32_1 = arith.constant 0 : i32
    %c0_i32_2 = arith.constant 0 : i32
    return %c0_i32, %c0_i32_0, %c0_i32_1 : i32, i32, i32
  }
  func.func @transform_2(%arg0: i32) -> (i32, i32) {
    %c0_i32 = arith.constant 0 : i32
    %c0_i32_0 = arith.constant 0 : i32
    %c0_i32_1 = arith.constant 0 : i32
    return %c0_i32, %c0_i32_0 : i32, i32
  }
  func.func @transform_3(%arg0: i32) -> (i32, i32) {
    %c0_i32 = arith.constant 0 : i32
    %c0_i32_0 = arith.constant 0 : i32
    %c0_i32_1 = arith.constant 0 : i32
    return %c0_i32, %c0_i32_0 : i32, i32
  }
  func.func @transform_4(%arg0: i32) -> (i32, i32) {
    %c0_i32 = arith.constant 0 : i32
    %c0_i32_0 = arith.constant 0 : i32
    %c0_i32_1 = arith.constant 0 : i32
    return %c0_i32, %c0_i32_0 : i32, i32
  }
  func.func @transform_5(%arg0: i32) -> (i32, i32, i32) {
    %c0_i32 = arith.constant 0 : i32
    %c0_i32_0 = arith.constant 0 : i32
    %c0_i32_1 = arith.constant 0 : i32
    return %arg0, %c0_i32, %c0_i32_0 : i32, i32, i32
  }
  func.func @transform_6(%arg0: i32) -> (i32, i32) {
    %c0_i32 = arith.constant 0 : i32
    %c0_i32_0 = arith.constant 0 : i32
    return %arg0, %c0_i32 : i32, i32
  }
}

</mosaic_0001>

<llo_original>
// kernel: tpu_custom_call.1
$region0: #{tpu_custom_call.1}
  #allocation0 [shape = 'u32[]', space=smem, size = 0x4, offset = 0x4, fixed_abs, tag = 'smem constant byte address 0x4 - core index']
  #allocation1 [shape = 'u32[72,128]{1,0:T(1,128)}', space=vmem, size = 0x9000, scoped, tag = 'internal scratch']
  #allocation2 [shape = 'f32[1,1]{1,0:T(1,128)S(1)}', space=vmem, size = 0x200, scoped, tag = 'scoped memory for tpu_custom_call.1']
  %s0 = inlined_call_operand.vmem [shape: f32[2,4,384], index: 0, kind: input, shape index: {}]
  %s1 = inlined_call_operand.vmem [shape: f32[9,8,4], index: 1, kind: input, shape index: {}]
  %s2 = inlined_call_operand.vmem [shape: f32[8,1], index: 2, kind: input, shape index: {}]
  %s3 = inlined_call_operand.vmem [shape: f32[8,1], index: 3, kind: input, shape index: {}]
  %s4 = inlined_call_operand.<no memory space> [shape: f32[1,1], index: 4, kind: input, shape index: {}]
  %s5 = inlined_call_operand.hbm [shape: f32[2,8,256], index: 5, kind: output, shape index: {0}]
  %s6 = inlined_call_operand.hbm [shape: f32[16,128], index: 6, kind: output, shape index: {1}]
  %7 = xla_tuple %s5, %s6
  %s8 = sld [smem:[#allocation0]]
  $region61: #{tpu_custom_call.1} parent=0
    _
  %s10 = ssub.s32 1, %s8
  %s11 = scalar_select 0, %s10, %s8
  %v12 = vstv %s4
  %13 = vst [vmem:[#allocation2] sm:$0x1] %v12
  $region1: #{tpu_custom_call.1} parent=0
    #allocation3 [shape = 'u8[16384]{0}', space=vmem, size = 0x4000, scoped, tag = 'output window, operand 0']
    #allocation4 [shape = 's32[2]{0}', space=sflag, size = 0x8, scoped, tag = 'scoped memory for tpu_custom_call.1']
    #allocation5 [shape = 'u8[8192]{0}', space=vmem, size = 0x2000, scoped, tag = 'output window, operand 1']
    #allocation6 [shape = 's32[2]{0}', space=sflag, size = 0x8, scoped, tag = 'scoped memory for tpu_custom_call.1']
    %14 = vsyncpa [#allocation4], 0
    %s15 = scalar_lea.sflag [#allocation4], 1
    %16 = vsyncpa %s15, 0
    %17 = vsyncpa [#allocation6], 0
    %s18 = scalar_lea.sflag [#allocation6], 1
    %19 = vsyncpa %s18, 0
    loop: start=0, step=1, limit=4
    $region2: #{tpu_custom_call.1} parent=1 // loop_pre_header
      _
    $region3: #{tpu_custom_call.1} parent=1 // loop_header
      %s21 = sphi 0, %s25
      %p22 = scmp.ge.s32.totalorder %s21, 4
      %s31 = sphi 0, %s33
      %s34 = sphi 0, %s31
      %s35 = sphi 0, %s34
      %s51 = sphi 0, %s35
      %s55 = sphi 0, %s55
      %s57 = sphi 0, %s55
      %s58 = sphi 0, %s57
      %s72 = sphi 0, %s58
      %s76 = sphi 0, %s76
      %s78 = sphi 0, %s76
      %s79 = sphi 0, %s78
      %s93 = sphi 0, %s79
      %s97 = sphi 0, %s97
      %s99 = sphi 0, %s97
      %s100 = sphi 0, %s99
      %s114 = sphi 0, %s100
      %s118 = sphi 0, %s118
      %s120 = sphi 0, %s118
      %s121 = sphi 0, %s120
      %s135 = sphi 0, %s121
      %s141 = sphi 0, %s143
      %s144 = sphi 0, %s141
      %s145 = sphi 0, %s144
      %s161 = sphi 0, %s145
      %s167 = sphi 0, %s169
      %s170 = sphi 0, %s167
      %s171 = sphi 0, %s170
      %s187 = sphi 0, %s171
    $region4: #{tpu_custom_call.1} parent=1 // loop_header_branch
      %24 = sbr.rel (%p22) target = $region8
    $region5: #{tpu_custom_call.1} parent=1 // loop_body
      %s26 = ssub.s32 %s21, 1
      %s27 = ssub.s32 %s21, 2
      %s28 = sadd.s32 %s21, 1
      %s29 = ssub.s32 %s21, %s28
      %p30 = scmp.eq.s32.totalorder %s29, 0
      %s32 = sadd.s32 %s31, 1
      %s33 = scalar_select %p30, %s31, %s32
      %p36 = pneg %p30
      %p37 = scmp.eq.s32.totalorder %s21, 1
      %p38 = por %p36, %p37
      %p39 = scmp.ne.s32.totalorder %s31, %s34
      %p40 = scmp.eq.s32.totalorder %s21, 0
      %p41 = por %p39, %p40
      %p42 = scmp.ne.s32.totalorder %s31, %s34
      %p43 = scmp.eq.s32.totalorder %s26, 1
      %p44 = por %p42, %p43
      %p45 = scmp.ne.s32.totalorder %s34, %s35
      %p46 = scmp.eq.s32.totalorder %s26, 0
      %p47 = por %p45, %p46
      %p48 = scmp.ne.s32.totalorder %s34, %s35
      %p49 = scmp.eq.s32.totalorder %s27, 1
      %p50 = por %p48, %p49
      %p52 = scmp.ne.s32.totalorder %s35, %s51
      %p53 = scmp.eq.s32.totalorder %s27, 0
      %p54 = por %p52, %p53
      %s56 = sadd.s32 %s55, 1
      %p59 = scmp.eq.s32.totalorder %s21, 1
      %p60 = scmp.ne.s32.totalorder %s55, %s57
      %p61 = scmp.eq.s32.totalorder %s21, 0
      %p62 = por %p60, %p61
      %p63 = scmp.ne.s32.totalorder %s55, %s57
      %p64 = scmp.eq.s32.totalorder %s26, 1
      %p65 = por %p63, %p64
      %p66 = scmp.ne.s32.totalorder %s57, %s58
      %p67 = scmp.eq.s32.totalorder %s26, 0
      %p68 = por %p66, %p67
      %p69 = scmp.ne.s32.totalorder %s57, %s58
      %p70 = scmp.eq.s32.totalorder %s27, 1
      %p71 = por %p69, %p70
      %p73 = scmp.ne.s32.totalorder %s58, %s72
      %p74 = scmp.eq.s32.totalorder %s27, 0
      %p75 = por %p73, %p74
      %s77 = sadd.s32 %s76, 1
      %p80 = scmp.eq.s32.totalorder %s21, 1
      %p81 = scmp.ne.s32.totalorder %s76, %s78
      %p82 = scmp.eq.s32.totalorder %s21, 0
      %p83 = por %p81, %p82
      %p84 = scmp.ne.s32.totalorder %s76, %s78
      %p85 = scmp.eq.s32.totalorder %s26, 1
      %p86 = por %p84, %p85
      %p87 = scmp.ne.s32.totalorder %s78, %s79
      %p88 = scmp.eq.s32.totalorder %s26, 0
      %p89 = por %p87, %p88
      %p90 = scmp.ne.s32.totalorder %s78, %s79
      %p91 = scmp.eq.s32.totalorder %s27, 1
      %p92 = por %p90, %p91
      %p94 = scmp.ne.s32.totalorder %s79, %s93
      %p95 = scmp.eq.s32.totalorder %s27, 0
      %p96 = por %p94, %p95
      %s98 = sadd.s32 %s97, 1
      %p101 = scmp.eq.s32.totalorder %s21, 1
      %p102 = scmp.ne.s32.totalorder %s97, %s99
      %p103 = scmp.eq.s32.totalorder %s21, 0
      %p104 = por %p102, %p103
      %p105 = scmp.ne.s32.totalorder %s97, %s99
      %p106 = scmp.eq.s32.totalorder %s26, 1
      %p107 = por %p105, %p106
      %p108 = scmp.ne.s32.totalorder %s99, %s100
      %p109 = scmp.eq.s32.totalorder %s26, 0
      %p110 = por %p108, %p109
      %p111 = scmp.ne.s32.totalorder %s99, %s100
      %p112 = scmp.eq.s32.totalorder %s27, 1
      %p113 = por %p111, %p112
      %p115 = scmp.ne.s32.totalorder %s100, %s114
      %p116 = scmp.eq.s32.totalorder %s27, 0
      %p117 = por %p115, %p116
      %s119 = sadd.s32 %s118, 1
      %p122 = scmp.eq.s32.totalorder %s21, 1
      %p123 = scmp.ne.s32.totalorder %s118, %s120
      %p124 = scmp.eq.s32.totalorder %s21, 0
      %p125 = por %p123, %p124
      %p126 = scmp.ne.s32.totalorder %s118, %s120
      %p127 = scmp.eq.s32.totalorder %s26, 1
      %p128 = por %p126, %p127
      %p129 = scmp.ne.s32.totalorder %s120, %s121
      %p130 = scmp.eq.s32.totalorder %s26, 0
      %p131 = por %p129, %p130
      %p132 = scmp.ne.s32.totalorder %s120, %s121
      %p133 = scmp.eq.s32.totalorder %s27, 1
      %p134 = por %p132, %p133
      %p136 = scmp.ne.s32.totalorder %s121, %s135
      %p137 = scmp.eq.s32.totalorder %s27, 0
      %p138 = por %p136, %p137
      %s139 = ssub.s32 %s21, %s28
      %p140 = scmp.eq.s32.totalorder %s139, 0
      %s142 = sadd.s32 %s141, 1
      %s143 = scalar_select %p140, %s141, %s142
      %p146 = pneg %p140
      %p147 = scmp.eq.s32.totalorder %s21, 1
      %p148 = por %p146, %p147
      %p149 = scmp.ne.s32.totalorder %s141, %s144
      %p150 = scmp.eq.s32.totalorder %s21, 0
      %p151 = por %p149, %p150
      %p152 = scmp.ne.s32.totalorder %s141, %s144
      %p153 = scmp.eq.s32.totalorder %s26, 1
      %p154 = por %p152, %p153
      %p155 = scmp.ne.s32.totalorder %s144, %s145
      %p156 = scmp.eq.s32.totalorder %s26, 0
      %p157 = por %p155, %p156
      %p158 = scmp.ne.s32.totalorder %s144, %s145
      %p159 = scmp.eq.s32.totalorder %s27, 1
      %p160 = por %p158, %p159
      %p162 = scmp.ne.s32.totalorder %s145, %s161
      %p163 = scmp.eq.s32.totalorder %s27, 0
      %p164 = por %p162, %p163
      %s165 = ssub.s32 %s21, %s28
      %p166 = scmp.eq.s32.totalorder %s165, 0
      %s168 = sadd.s32 %s167, 1
      %s169 = scalar_select %p166, %s167, %s168
      %p172 = pneg %p166
      %p173 = scmp.eq.s32.totalorder %s21, 1
      %p174 = por %p172, %p173
      %p175 = scmp.ne.s32.totalorder %s167, %s170
      %p176 = scmp.eq.s32.totalorder %s21, 0
      %p177 = por %p175, %p176
      %p178 = scmp.ne.s32.totalorder %s167, %s170
      %p179 = scmp.eq.s32.totalorder %s26, 1
      %p180 = por %p178, %p179
      %p181 = scmp.ne.s32.totalorder %s170, %s171
      %p182 = scmp.eq.s32.totalorder %s26, 0
      %p183 = por %p181, %p182
      %p184 = scmp.ne.s32.totalorder %s170, %s171
      %p185 = scmp.eq.s32.totalorder %s27, 1
      %p186 = por %p184, %p185
      %p188 = scmp.ne.s32.totalorder %s171, %s187
      %p189 = scmp.eq.s32.totalorder %s27, 0
      %p190 = por %p188, %p189
      %p191 = scmp.le.s32.totalorder 1, %s21
      %p192 = scmp.lt.s32.totalorder %s21, 3
      %p193 = pnand %p191, %p192
      %p194 = pneg %p193
      // Predicated region
      $region9: #{tpu_custom_call.1} parent=5 // pred_check
        _
      $region10: #{tpu_custom_call.1} parent=5 // pred_check_branch
        %196 = sbr.rel (%p193) target = $region12
      $region11: #{tpu_custom_call.1} parent=5 // pred_region
        %s197 = ssub.s32 %s21, 1
        // Predicated region
        $region13: #{tpu_custom_call.1} parent=11 // pred_check
          %p198 = pneg %p68
        $region14: #{tpu_custom_call.1} parent=11 // pred_check_branch
          %200 = sbr.rel (%p198) target = $region16
        $region15: #{tpu_custom_call.1} parent=11 // pred_region
          _
        $region16: #{tpu_custom_call.1} parent=11 // pred_fallthru
          _
        // Predicated region
        $region17: #{tpu_custom_call.1} parent=11 // pred_check
          %p201 = pneg %p89
        $region18: #{tpu_custom_call.1} parent=11 // pred_check_branch
          %203 = sbr.rel (%p201) target = $region20
        $region19: #{tpu_custom_call.1} parent=11 // pred_region
          _
        $region20: #{tpu_custom_call.1} parent=11 // pred_fallthru
          _
        // Predicated region
        $region21: #{tpu_custom_call.1} parent=11 // pred_check
          %p204 = pneg %p110
        $region22: #{tpu_custom_call.1} parent=11 // pred_check_branch
          %206 = sbr.rel (%p204) target = $region24
        $region23: #{tpu_custom_call.1} parent=11 // pred_region
          _
        $region24: #{tpu_custom_call.1} parent=11 // pred_fallthru
          _
        // Predicated region
        $region25: #{tpu_custom_call.1} parent=11 // pred_check
          %p207 = pneg %p131
        $region26: #{tpu_custom_call.1} parent=11 // pred_check_branch
          %209 = sbr.rel (%p207) target = $region28
        $region27: #{tpu_custom_call.1} parent=11 // pred_region
          _
        $region28: #{tpu_custom_call.1} parent=11 // pred_fallthru
          _
      $region12: #{tpu_custom_call.1} parent=5 // pred_fallthru
        _
      %p210 = scmp.lt.s32.totalorder %s21, 2
      // Predicated region
      $region29: #{tpu_custom_call.1} parent=5 // pred_check
        %p211 = pneg %p210
      $region30: #{tpu_custom_call.1} parent=5 // pred_check_branch
        %213 = sbr.rel (%p211) target = $region32
      $region31: #{tpu_custom_call.1} parent=5 // pred_region
        // Predicated region
        $region33: #{tpu_custom_call.1} parent=31 // pred_check
          %p214 = pneg %p41
        $region34: #{tpu_custom_call.1} parent=31 // pred_check_branch
          %216 = sbr.rel (%p214) target = $region36
        $region35: #{tpu_custom_call.1} parent=31 // pred_region
          %p217 = scmp.lt.s32.totalorder %s21, 1
          %s218 = scalar_select %p217, %s21, 1
          %s219 = smul.addr %s218, 3
          %s220 = smul.addr %s219, 4
          %s221 = scalar_lea.vmem %s0, %s220
        $region36: #{tpu_custom_call.1} parent=31 // pred_fallthru
          _
      $region32: #{tpu_custom_call.1} parent=5 // pred_fallthru
        _
      %p222 = scmp.le.s32.totalorder 1, %s21
      %p223 = scmp.lt.s32.totalorder %s21, 3
      %p224 = pnand %p222, %p223
      %p225 = pneg %p224
      // Predicated region
      $region37: #{tpu_custom_call.1} parent=5 // pred_check
        _
      $region38: #{tpu_custom_call.1} parent=5 // pred_check_branch
        %227 = sbr.rel (%p224) target = $region40
      $region39: #{tpu_custom_call.1} parent=5 // pred_region
        %s228 = ssub.s32 %s21, 1
        %p229 = scmp.lt.s32.totalorder %s26, 1
        %s230 = scalar_select %p229, %s26, 1
        %s231 = smul.addr %s230, 3
        %s232 = smul.addr %s231, 4
        %s233 = scalar_lea.vmem %s0, %s232
        %p234 = pneg %p47
        %p235 = pneg %p44
        %p236 = pneg %p68
        %p237 = pneg %p65
        %p238 = pneg %p89
        %p239 = pneg %p86
        %p240 = pneg %p110
        %p241 = pneg %p107
        %p242 = pneg %p131
        %p243 = pneg %p128
        %p244 = pneg %p157
        %p245 = pneg %p154
        %s246 = sand.u32 %s144, 1
        %s247 = scalar_lea.sflag [#allocation4], %s246
        %s248 = sand.u32 %s144, 1
        %s249 = smul.addr %s248, 16
        %s250 = scalar_lea.vmem [#allocation3], %s249
        %p251 = pneg %p183
        %p252 = pneg %p180
        %s253 = sand.u32 %s170, 1
        %s254 = scalar_lea.sflag [#allocation6], %s253
        %s255 = sand.u32 %s170, 1
        %s256 = smul.addr %s255, 8
        %s257 = scalar_lea.vmem [#allocation5], %s256
        %p258 = scmp.lt.s32.totalorder %s26, 1
        %s259 = scalar_select %p258, %s26, 1
        %s260 = smul.addr %s259, 3
        %s261 = smul.addr %s260, 4
        %s262 = scalar_lea.vmem %s0, %s261
        %v263 = vlaneseq
        %v264 = vand.u32 %v263, 127
        %v265 = vadd.s32 %v264, 128
        %vm266 = vcmp.lt.s32.totalorder %v264, 0
        %v267 = vsub.s32 0, %v264
        %v268 = vsel %vm266, %v267, %v264
        %v269 = vshrl.u32 %v268, 4
        %v270 = vand.u32 %v268, 15
        %v271 = vsub.s32 0, %v270
        %v272 = vsel %vm266, %v271, %v270
        %vm273 = vcmp.lt.s32.totalorder %v265, 0
        %v274 = vsub.s32 0, %v265
        %v275 = vsel %vm273, %v274, %v265
        %v276 = vshrl.u32 %v275, 4
        %v277 = vand.u32 %v275, 15
        %v278 = vsub.s32 0, %v277
        %v279 = vsel %vm273, %v278, %v277
        %vm280 = vcmp.ne.s32.totalorder %v272, 0
        %vm281 = vcmp.ne.s32.totalorder %v279, 0
        %vm282 = vcmp.lt.s32.totalorder %v272, 0
        %vm283 = vcmp.lt.s32.totalorder %v279, 0
        %vm284 = vmand %vm282, %vm280
        %vm285 = vmand %vm283, %vm281
        %v286 = vadd.s32 %v272, 16
        %v287 = vadd.s32 %v279, 16
        %v288 = vsel %vm284, %v286, %v272
        %v289 = vsel %vm285, %v287, %v279
        %vm290 = vcmp.ne.s32.totalorder %v288, 0
        %vm291 = vcmp.ne.s32.totalorder %v289, 0
        %vm292 = vcmp.ne.s32.totalorder %v288, 15
        %vm293 = vcmp.ne.s32.totalorder %v289, 15
        %vm294 = vcmp.lt.s32.totalorder %v264, 256
        %vm295 = vcmp.lt.s32.totalorder %v265, 256
        %v296 = vld [vmem:[%s262] sm:$0xff]
        %v297 = vsel %vm290, 1, 0
        %v298 = vsel %vm291, 1, 0
        %vm299 = vcmp.eq.s32.totalorder %v297, 1
        %vm300 = vcmp.eq.s32.totalorder %v298, 1
        %302 = vst [vmem:[#allocation1] ss:$2 sm:$0xff] %v296
        %v303 = vld.sshfl [vmem:[#allocation1] sm:$0xff pattern:$0x75316420]
        %v304 = vld.sshfl [vmem:[#allocation1 + $0x8] sm:$0xff pattern:$0x75316420]
        %v307 = vsel %vm299, %v303, 0.0
        %v308 = vsel %vm300, %v304, 0.0
        %v309 = vld [vmem:[%s1] sm:$0xff]
        %v310 = vld [vmem:[%s262] sm:$0xff]
        %v311 = vld [vmem:[%s262 + $0x8] sm:$0xf]
        %s312 = scalar_lea.vmem %s1, 8
        %v313 = vld [vmem:[%s312] sm:$0xff]
        %316 = vst [vmem:[#allocation1] ss:$2 sm:$0xff] %v310
        %s317 = scalar_lea.vmem [#allocation1], 16
        %318 = vst [vmem:[%s317] ss:$2 sm:$0xff] %v311
        %v319 = vld.sshfl [vmem:[#allocation1] sm:$0xff pattern:$0x75316420]
        %v320 = vld.sshfl [vmem:[#allocation1 + $0x8] sm:$0xff pattern:$0x75316420]
        %v321 = vld.sshfl [vmem:[#allocation1 + $0x10] sm:$0xff pattern:$0x75316420]
        %322 = vrot.lane.b32.xlu0 %v319, 127
        %v323 = vpop.permute.xlu0 %322
        %324 = vrot.lane.b32.xlu0 %v320, 127
        %v325 = vpop.permute.xlu0 %324
        %326 = vrot.lane.b32.xlu0 %v321, 127
        %v327 = vpop.permute.xlu0 %326
        %vm328 = vcmask 1039360
        %v329 = vsel %vm328, %v323, %v325
        %v330 = vsel %vm328, %v325, %v327
        %vm331 = vcmask 31744
        %v333 = vsel %vm331, %v313, 0
        %vm335 = vcmask 1043456
        %v336 = vsel %vm335, %v329, 0
        %v338 = vsel %vm335, %v330, 0
        %340 = vmatpush.msra.mxu0 0.0
        %341 = vmatpush.msra.mxu0 0.0
        %342 = vmatpush.msra.mxu0 0.0
        %343 = vmatpush.msra.mxu0 0.0
        %344 = vmatpush.msra.mxu0 0.0
        %345 = vmatpush.msra.mxu0 0.0
        %346 = vmatpush.msra.mxu0 0.0
        %347 = vmatpush.msra.mxu0 0.0
        %348 = vmatpush.msra.mxu0 0.0
        %349 = vmatpush.msra.mxu0 0.0
        %350 = vmatpush.msra.mxu0 0.0
        %351 = vmatpush.msra.mxu0 0.0
        %352 = vmatpush.msra.mxu0 0.0
        %353 = vmatpush.msra.mxu0 0.0
        %354 = vmatpush.msra.mxu0 0.0
        %355 = vmatpush.msra.mxu0 %v336
        %356 = vmatmul.f32.gmra.mxu0 %v333
        %v357 = vpop.f32.mrf.mxu0
        %v358 = vadd.f32 0.0, %v357
        %359 = vdwg.mxu0
        %360 = vmatpush.msra.mxu0 0.0
        %361 = vmatpush.msra.mxu0 0.0
        %362 = vmatpush.msra.mxu0 0.0
        %363 = vmatpush.msra.mxu0 0.0
        %364 = vmatpush.msra.mxu0 0.0
        %365 = vmatpush.msra.mxu0 0.0
        %366 = vmatpush.msra.mxu0 0.0
        %367 = vmatpush.msra.mxu0 0.0
        %368 = vmatpush.msra.mxu0 0.0
        %369 = vmatpush.msra.mxu0 0.0
        %370 = vmatpush.msra.mxu0 0.0
        %371 = vmatpush.msra.mxu0 0.0
        %372 = vmatpush.msra.mxu0 0.0
        %373 = vmatpush.msra.mxu0 0.0
        %374 = vmatpush.msra.mxu0 0.0
        %375 = vmatpush.msra.mxu0 %v338
        %376 = vmatmul.f32.gmra.mxu0 %v333
        %v377 = vpop.f32.mrf.mxu0
        %v378 = vadd.f32 0.0, %v377
        %379 = vdwg.mxu0
        %v381 = vsel %vm331, %v309, 0
        %v384 = vsel %vm335, %v307, 0
        %v387 = vsel %vm335, %v308, 0
        %389 = vmatpush.msra.mxu0 0.0
        %390 = vmatpush.msra.mxu0 0.0
        %391 = vmatpush.msra.mxu0 0.0
        %392 = vmatpush.msra.mxu0 0.0
        %393 = vmatpush.msra.mxu0 0.0
        %394 = vmatpush.msra.mxu0 0.0
        %395 = vmatpush.msra.mxu0 0.0
        %396 = vmatpush.msra.mxu0 0.0
        %397 = vmatpush.msra.mxu0 0.0
        %398 = vmatpush.msra.mxu0 0.0
        %399 = vmatpush.msra.mxu0 0.0
        %400 = vmatpush.msra.mxu0 0.0
        %401 = vmatpush.msra.mxu0 0.0
        %402 = vmatpush.msra.mxu0 0.0
        %403 = vmatpush.msra.mxu0 0.0
        %404 = vmatpush.msra.mxu0 %v384
        %405 = vmatmul.f32.gmra.mxu0 %v381
        %v406 = vpop.f32.mrf.mxu0
        %v407 = vadd.f32 %v358, %v406
        %408 = vdwg.mxu0
        %409 = vmatpush.msra.mxu0 0.0
        %410 = vmatpush.msra.mxu0 0.0
        %411 = vmatpush.msra.mxu0 0.0
        %412 = vmatpush.msra.mxu0 0.0
        %413 = vmatpush.msra.mxu0 0.0
        %414 = vmatpush.msra.mxu0 0.0
        %415 = vmatpush.msra.mxu0 0.0
        %416 = vmatpush.msra.mxu0 0.0
        %417 = vmatpush.msra.mxu0 0.0
        %418 = vmatpush.msra.mxu0 0.0
        %419 = vmatpush.msra.mxu0 0.0
        %420 = vmatpush.msra.mxu0 0.0
        %421 = vmatpush.msra.mxu0 0.0
        %422 = vmatpush.msra.mxu0 0.0
        %423 = vmatpush.msra.mxu0 0.0
        %424 = vmatpush.msra.mxu0 %v387
        %425 = vmatmul.f32.gmra.mxu0 %v381
        %v426 = vpop.f32.mrf.mxu0
        %v427 = vadd.f32 %v378, %v426
        %428 = vdwg.mxu0
        %v429 = vld [vmem:[%s262] sm:$0xff]
        %v430 = vld [vmem:[%s262 + $0x8] sm:$0xf]
        %v431 = vsel %vm292, 1, 0
        %v432 = vsel %vm293, 1, 0
        %vm433 = vcmp.eq.s32.totalorder %v431, 1
        %vm434 = vcmp.eq.s32.totalorder %v432, 1
        %437 = vst [vmem:[#allocation1] ss:$2 sm:$0xff] %v429
        %s438 = scalar_lea.vmem [#allocation1], 16
        %439 = vst [vmem:[%s438] ss:$2 sm:$0xff] %v430
        %v440 = vld.sshfl [vmem:[#allocation1] sm:$0xff pattern:$0x75316420]
        %v441 = vld.sshfl [vmem:[#allocation1 + $0x8] sm:$0xff pattern:$0x75316420]
        %v442 = vld.sshfl [vmem:[#allocation1 + $0x10] sm:$0xff pattern:$0x75316420]
        %443 = vrot.lane.b32.xlu0 %v440, 126
        %v444 = vpop.permute.xlu0 %443
        %445 = vrot.lane.b32.xlu0 %v441, 126
        %v446 = vpop.permute.xlu0 %445
        %447 = vrot.lane.b32.xlu0 %v442, 126
        %v448 = vpop.permute.xlu0 %447
        %vm449 = vcmask 1031168
        %v450 = vsel %vm449, %v444, %v446
        %v451 = vsel %vm449, %v446, %v448
        %v454 = vsel %vm433, %v450, 0.0
        %v455 = vsel %vm434, %v451, 0.0
        %s456 = scalar_lea.vmem %s1, 16
        %v457 = vld [vmem:[%s456] sm:$0xff]
        %v459 = vsel %vm331, %v457, 0
        %v462 = vsel %vm335, %v454, 0
        %v465 = vsel %vm335, %v455, 0
        %467 = vmatpush.msra.mxu0 0.0
        %468 = vmatpush.msra.mxu0 0.0
        %469 = vmatpush.msra.mxu0 0.0
        %470 = vmatpush.msra.mxu0 0.0
        %471 = vmatpush.msra.mxu0 0.0
        %472 = vmatpush.msra.mxu0 0.0
        %473 = vmatpush.msra.mxu0 0.0
        %474 = vmatpush.msra.mxu0 0.0
        %475 = vmatpush.msra.mxu0 0.0
        %476 = vmatpush.msra.mxu0 0.0
        %477 = vmatpush.msra.mxu0 0.0
        %478 = vmatpush.msra.mxu0 0.0
        %479 = vmatpush.msra.mxu0 0.0
        %480 = vmatpush.msra.mxu0 0.0
        %481 = vmatpush.msra.mxu0 0.0
        %482 = vmatpush.msra.mxu0 %v462
        %483 = vmatmul.f32.gmra.mxu0 %v459
        %v484 = vpop.f32.mrf.mxu0
        %v485 = vadd.f32 0.0, %v484
        %486 = vdwg.mxu0
        %487 = vmatpush.msra.mxu0 0.0
        %488 = vmatpush.msra.mxu0 0.0
        %489 = vmatpush.msra.mxu0 0.0
        %490 = vmatpush.msra.mxu0 0.0
        %491 = vmatpush.msra.mxu0 0.0
        %492 = vmatpush.msra.mxu0 0.0
        %493 = vmatpush.msra.mxu0 0.0
        %494 = vmatpush.msra.mxu0 0.0
        %495 = vmatpush.msra.mxu0 0.0
        %496 = vmatpush.msra.mxu0 0.0
        %497 = vmatpush.msra.mxu0 0.0
        %498 = vmatpush.msra.mxu0 0.0
        %499 = vmatpush.msra.mxu0 0.0
        %500 = vmatpush.msra.mxu0 0.0
        %501 = vmatpush.msra.mxu0 0.0
        %502 = vmatpush.msra.mxu0 %v465
        %503 = vmatmul.f32.gmra.mxu0 %v459
        %v504 = vpop.f32.mrf.mxu0
        %v505 = vadd.f32 0.0, %v504
        %506 = vdwg.mxu0
        %v507 = vadd.f32 %v407, %v485
        %v508 = vadd.f32 %v427, %v505
        %v509 = vld [vmem:[%s262] sm:$0xff]
        %v510 = vld [vmem:[%s262 + $0x8] sm:$0xf]
        %513 = vst [vmem:[#allocation1] ss:$2 sm:$0xff] %v509
        %s514 = scalar_lea.vmem [#allocation1], 16
        %515 = vst [vmem:[%s514] ss:$2 sm:$0xff] %v510
        %v516 = vld.sshfl [vmem:[#allocation1] sm:$0xff pattern:$0x75316420]
        %v517 = vld.sshfl [vmem:[#allocation1 + $0x8] sm:$0xff pattern:$0x75316420]
        %v518 = vld.sshfl [vmem:[#allocation1 + $0x10] sm:$0xff pattern:$0x75316420]
        %519 = vrot.lane.b32.xlu0 %v516, 112
        %v520 = vpop.permute.xlu0 %519
        %521 = vrot.lane.b32.xlu0 %v517, 112
        %v522 = vpop.permute.xlu0 %521
        %523 = vrot.lane.b32.xlu0 %v518, 112
        %v524 = vpop.permute.xlu0 %523
        %vm525 = vcmask 916480
        %v526 = vsel %vm525, %v520, %v522
        %v527 = vsel %vm525, %v522, %v524
        %v530 = vsel %vm299, %v526, 0.0
        %v531 = vsel %vm300, %v527, 0.0
        %s532 = scalar_lea.vmem %s1, 24
        %v533 = vld [vmem:[%s532] sm:$0xff]
        %v535 = vsel %vm331, %v533, 0
        %v538 = vsel %vm335, %v530, 0
        %v541 = vsel %vm335, %v531, 0
        %543 = vmatpush.msra.mxu0 0.0
        %544 = vmatpush.msra.mxu0 0.0
        %545 = vmatpush.msra.mxu0 0.0
        %546 = vmatpush.msra.mxu0 0.0
        %547 = vmatpush.msra.mxu0 0.0
        %548 = vmatpush.msra.mxu0 0.0
        %549 = vmatpush.msra.mxu0 0.0
        %550 = vmatpush.msra.mxu0 0.0
        %551 = vmatpush.msra.mxu0 0.0
        %552 = vmatpush.msra.mxu0 0.0
        %553 = vmatpush.msra.mxu0 0.0
        %554 = vmatpush.msra.mxu0 0.0
        %555 = vmatpush.msra.mxu0 0.0
        %556 = vmatpush.msra.mxu0 0.0
        %557 = vmatpush.msra.mxu0 0.0
        %558 = vmatpush.msra.mxu0 %v538
        %559 = vmatmul.f32.gmra.mxu0 %v535
        %v560 = vpop.f32.mrf.mxu0
        %v561 = vadd.f32 0.0, %v560
        %562 = vdwg.mxu0
        %563 = vmatpush.msra.mxu0 0.0
        %564 = vmatpush.msra.mxu0 0.0
        %565 = vmatpush.msra.mxu0 0.0
        %566 = vmatpush.msra.mxu0 0.0
        %567 = vmatpush.msra.mxu0 0.0
        %568 = vmatpush.msra.mxu0 0.0
        %569 = vmatpush.msra.mxu0 0.0
        %570 = vmatpush.msra.mxu0 0.0
        %571 = vmatpush.msra.mxu0 0.0
        %572 = vmatpush.msra.mxu0 0.0
        %573 = vmatpush.msra.mxu0 0.0
        %574 = vmatpush.msra.mxu0 0.0
        %575 = vmatpush.msra.mxu0 0.0
        %576 = vmatpush.msra.mxu0 0.0
        %577 = vmatpush.msra.mxu0 0.0
        %578 = vmatpush.msra.mxu0 %v541
        %579 = vmatmul.f32.gmra.mxu0 %v535
        %v580 = vpop.f32.mrf.mxu0
        %v581 = vadd.f32 0.0, %v580
        %582 = vdwg.mxu0
        %v583 = vadd.f32 %v507, %v561
        %v584 = vadd.f32 %v508, %v581
        %v585 = vld [vmem:[%s262] sm:$0xff]
        %v586 = vld [vmem:[%s262 + $0x8] sm:$0xf]
        %s587 = scalar_lea.vmem %s1, 32
        %v588 = vld [vmem:[%s587] sm:$0xff]
        %591 = vst [vmem:[#allocation1] ss:$2 sm:$0xff] %v585
        %s592 = scalar_lea.vmem [#allocation1], 16
        %593 = vst [vmem:[%s592] ss:$2 sm:$0xff] %v586
        %v594 = vld.sshfl [vmem:[#allocation1] sm:$0xff pattern:$0x75316420]
        %v595 = vld.sshfl [vmem:[#allocation1 + $0x8] sm:$0xff pattern:$0x75316420]
        %v596 = vld.sshfl [vmem:[#allocation1 + $0x10] sm:$0xff pattern:$0x75316420]
        %597 = vrot.lane.b32.xlu0 %v594, 111
        %v598 = vpop.permute.xlu0 %597
        %599 = vrot.lane.b32.xlu0 %v595, 111
        %v600 = vpop.permute.xlu0 %599
        %601 = vrot.lane.b32.xlu0 %v596, 111
        %v602 = vpop.permute.xlu0 %601
        %vm603 = vcmask 908288
        %v604 = vsel %vm603, %v598, %v600
        %v605 = vsel %vm603, %v600, %v602
        %v607 = vsel %vm331, %v588, 0
        %v609 = vsel %vm335, %v604, 0
        %v611 = vsel %vm335, %v605, 0
        %613 = vmatpush.msra.mxu0 0.0
        %614 = vmatpush.msra.mxu0 0.0
        %615 = vmatpush.msra.mxu0 0.0
        %616 = vmatpush.msra.mxu0 0.0
        %617 = vmatpush.msra.mxu0 0.0
        %618 = vmatpush.msra.mxu0 0.0
        %619 = vmatpush.msra.mxu0 0.0
        %620 = vmatpush.msra.mxu0 0.0
        %621 = vmatpush.msra.mxu0 0.0
        %622 = vmatpush.msra.mxu0 0.0
        %623 = vmatpush.msra.mxu0 0.0
        %624 = vmatpush.msra.mxu0 0.0
        %625 = vmatpush.msra.mxu0 0.0
        %626 = vmatpush.msra.mxu0 0.0
        %627 = vmatpush.msra.mxu0 0.0
        %628 = vmatpush.msra.mxu0 %v609
        %629 = vmatmul.f32.gmra.mxu0 %v607
        %v630 = vpop.f32.mrf.mxu0
        %v631 = vadd.f32 0.0, %v630
        %632 = vdwg.mxu0
        %633 = vmatpush.msra.mxu0 0.0
        %634 = vmatpush.msra.mxu0 0.0
        %635 = vmatpush.msra.mxu0 0.0
        %636 = vmatpush.msra.mxu0 0.0
        %637 = vmatpush.msra.mxu0 0.0
        %638 = vmatpush.msra.mxu0 0.0
        %639 = vmatpush.msra.mxu0 0.0
        %640 = vmatpush.msra.mxu0 0.0
        %641 = vmatpush.msra.mxu0 0.0
        %642 = vmatpush.msra.mxu0 0.0
        %643 = vmatpush.msra.mxu0 0.0
        %644 = vmatpush.msra.mxu0 0.0
        %645 = vmatpush.msra.mxu0 0.0
        %646 = vmatpush.msra.mxu0 0.0
        %647 = vmatpush.msra.mxu0 0.0
        %648 = vmatpush.msra.mxu0 %v611
        %649 = vmatmul.f32.gmra.mxu0 %v607
        %v650 = vpop.f32.mrf.mxu0
        %v651 = vadd.f32 0.0, %v650
        %652 = vdwg.mxu0
        %v653 = vadd.f32 %v583, %v631
        %v654 = vadd.f32 %v584, %v651
        %v655 = vld [vmem:[%s262] sm:$0xff]
        %v656 = vld [vmem:[%s262 + $0x8] sm:$0xf]
        %659 = vst [vmem:[#allocation1] ss:$2 sm:$0xff] %v655
        %s660 = scalar_lea.vmem [#allocation1], 16
        %661 = vst [vmem:[%s660] ss:$2 sm:$0xff] %v656
        %v662 = vld.sshfl [vmem:[#allocation1] sm:$0xff pattern:$0x75316420]
        %v663 = vld.sshfl [vmem:[#allocation1 + $0x8] sm:$0xff pattern:$0x75316420]
        %v664 = vld.sshfl [vmem:[#allocation1 + $0x10] sm:$0xff pattern:$0x75316420]
        %665 = vrot.lane.b32.xlu0 %v662, 110
        %v666 = vpop.permute.xlu0 %665
        %667 = vrot.lane.b32.xlu0 %v663, 110
        %v668 = vpop.permute.xlu0 %667
        %669 = vrot.lane.b32.xlu0 %v664, 110
        %v670 = vpop.permute.xlu0 %669
        %vm671 = vcmask 900096
        %v672 = vsel %vm671, %v666, %v668
        %v673 = vsel %vm671, %v668, %v670
        %v676 = vsel %vm433, %v672, 0.0
        %v677 = vsel %vm434, %v673, 0.0
        %s678 = scalar_lea.vmem %s1, 40
        %v679 = vld [vmem:[%s678] sm:$0xff]
        %v681 = vsel %vm331, %v679, 0
        %v684 = vsel %vm335, %v676, 0
        %v687 = vsel %vm335, %v677, 0
        %689 = vmatpush.msra.mxu0 0.0
        %690 = vmatpush.msra.mxu0 0.0
        %691 = vmatpush.msra.mxu0 0.0
        %692 = vmatpush.msra.mxu0 0.0
        %693 = vmatpush.msra.mxu0 0.0
        %694 = vmatpush.msra.mxu0 0.0
        %695 = vmatpush.msra.mxu0 0.0
        %696 = vmatpush.msra.mxu0 0.0
        %697 = vmatpush.msra.mxu0 0.0
        %698 = vmatpush.msra.mxu0 0.0
        %699 = vmatpush.msra.mxu0 0.0
        %700 = vmatpush.msra.mxu0 0.0
        %701 = vmatpush.msra.mxu0 0.0
        %702 = vmatpush.msra.mxu0 0.0
        %703 = vmatpush.msra.mxu0 0.0
        %704 = vmatpush.msra.mxu0 %v684
        %705 = vmatmul.f32.gmra.mxu0 %v681
        %v706 = vpop.f32.mrf.mxu0
        %v707 = vadd.f32 0.0, %v706
        %708 = vdwg.mxu0
        %709 = vmatpush.msra.mxu0 0.0
        %710 = vmatpush.msra.mxu0 0.0
        %711 = vmatpush.msra.mxu0 0.0
        %712 = vmatpush.msra.mxu0 0.0
        %713 = vmatpush.msra.mxu0 0.0
        %714 = vmatpush.msra.mxu0 0.0
        %715 = vmatpush.msra.mxu0 0.0
        %716 = vmatpush.msra.mxu0 0.0
        %717 = vmatpush.msra.mxu0 0.0
        %718 = vmatpush.msra.mxu0 0.0
        %719 = vmatpush.msra.mxu0 0.0
        %720 = vmatpush.msra.mxu0 0.0
        %721 = vmatpush.msra.mxu0 0.0
        %722 = vmatpush.msra.mxu0 0.0
        %723 = vmatpush.msra.mxu0 0.0
        %724 = vmatpush.msra.mxu0 %v687
        %725 = vmatmul.f32.gmra.mxu0 %v681
        %v726 = vpop.f32.mrf.mxu0
        %v727 = vadd.f32 0.0, %v726
        %728 = vdwg.mxu0
        %v729 = vadd.f32 %v653, %v707
        %v730 = vadd.f32 %v654, %v727
        %v731 = vld [vmem:[%s262] sm:$0xff]
        %v732 = vld [vmem:[%s262 + $0x8] sm:$0xf]
        %735 = vst [vmem:[#allocation1] ss:$2 sm:$0xff] %v731
        %s736 = scalar_lea.vmem [#allocation1], 16
        %737 = vst [vmem:[%s736] ss:$2 sm:$0xff] %v732
        %v738 = vld.sshfl [vmem:[#allocation1] sm:$0xff pattern:$0x75316420]
        %v739 = vld.sshfl [vmem:[#allocation1 + $0x8] sm:$0xff pattern:$0x75316420]
        %v740 = vld.sshfl [vmem:[#allocation1 + $0x10] sm:$0xff pattern:$0x75316420]
        %741 = vrot.lane.b32.xlu0 %v738, 96
        %v742 = vpop.permute.xlu0 %741
        %743 = vrot.lane.b32.xlu0 %v739, 96
        %v744 = vpop.permute.xlu0 %743
        %745 = vrot.lane.b32.xlu0 %v740, 96
        %v746 = vpop.permute.xlu0 %745
        %vm747 = vcmask 785408
        %v748 = vsel %vm747, %v742, %v744
        %v749 = vsel %vm747, %v744, %v746
        %v752 = vsel %vm299, %v748, 0.0
        %v753 = vsel %vm300, %v749, 0.0
        %s754 = scalar_lea.vmem %s1, 48
        %v755 = vld [vmem:[%s754] sm:$0xff]
        %v757 = vsel %vm331, %v755, 0
        %v760 = vsel %vm335, %v752, 0
        %v763 = vsel %vm335, %v753, 0
        %765 = vmatpush.msra.mxu0 0.0
        %766 = vmatpush.msra.mxu0 0.0
        %767 = vmatpush.msra.mxu0 0.0
        %768 = vmatpush.msra.mxu0 0.0
        %769 = vmatpush.msra.mxu0 0.0
        %770 = vmatpush.msra.mxu0 0.0
        %771 = vmatpush.msra.mxu0 0.0
        %772 = vmatpush.msra.mxu0 0.0
        %773 = vmatpush.msra.mxu0 0.0
        %774 = vmatpush.msra.mxu0 0.0
        %775 = vmatpush.msra.mxu0 0.0
        %776 = vmatpush.msra.mxu0 0.0
        %777 = vmatpush.msra.mxu0 0.0
        %778 = vmatpush.msra.mxu0 0.0
        %779 = vmatpush.msra.mxu0 0.0
        %780 = vmatpush.msra.mxu0 %v760
        %781 = vmatmul.f32.gmra.mxu0 %v757
        %v782 = vpop.f32.mrf.mxu0
        %v783 = vadd.f32 0.0, %v782
        %784 = vdwg.mxu0
        %785 = vmatpush.msra.mxu0 0.0
        %786 = vmatpush.msra.mxu0 0.0
        %787 = vmatpush.msra.mxu0 0.0
        %788 = vmatpush.msra.mxu0 0.0
        %789 = vmatpush.msra.mxu0 0.0
        %790 = vmatpush.msra.mxu0 0.0
        %791 = vmatpush.msra.mxu0 0.0
        %792 = vmatpush.msra.mxu0 0.0
        %793 = vmatpush.msra.mxu0 0.0
        %794 = vmatpush.msra.mxu0 0.0
        %795 = vmatpush.msra.mxu0 0.0
        %796 = vmatpush.msra.mxu0 0.0
        %797 = vmatpush.msra.mxu0 0.0
        %798 = vmatpush.msra.mxu0 0.0
        %799 = vmatpush.msra.mxu0 0.0
        %800 = vmatpush.msra.mxu0 %v763
        %801 = vmatmul.f32.gmra.mxu0 %v757
        %v802 = vpop.f32.mrf.mxu0
        %v803 = vadd.f32 0.0, %v802
        %804 = vdwg.mxu0
        %v805 = vadd.f32 %v729, %v783
        %v806 = vadd.f32 %v730, %v803
        %v807 = vld [vmem:[%s262] sm:$0xff]
        %v808 = vld [vmem:[%s262 + $0x8] sm:$0xf]
        %s809 = scalar_lea.vmem %s1, 56
        %v810 = vld [vmem:[%s809] sm:$0xff]
        %813 = vst [vmem:[#allocation1] ss:$2 sm:$0xff] %v807
        %s814 = scalar_lea.vmem [#allocation1], 16
        %815 = vst [vmem:[%s814] ss:$2 sm:$0xff] %v808
        %v816 = vld.sshfl [vmem:[#allocation1] sm:$0xff pattern:$0x75316420]
        %v817 = vld.sshfl [vmem:[#allocation1 + $0x8] sm:$0xff pattern:$0x75316420]
        %v818 = vld.sshfl [vmem:[#allocation1 + $0x10] sm:$0xff pattern:$0x75316420]
        %819 = vrot.lane.b32.xlu0 %v816, 95
        %v820 = vpop.permute.xlu0 %819
        %821 = vrot.lane.b32.xlu0 %v817, 95
        %v822 = vpop.permute.xlu0 %821
        %823 = vrot.lane.b32.xlu0 %v818, 95
        %v824 = vpop.permute.xlu0 %823
        %vm825 = vcmask 777216
        %v826 = vsel %vm825, %v820, %v822
        %v827 = vsel %vm825, %v822, %v824
        %v829 = vsel %vm331, %v810, 0
        %v831 = vsel %vm335, %v826, 0
        %v833 = vsel %vm335, %v827, 0
        %835 = vmatpush.msra.mxu0 0.0
        %836 = vmatpush.msra.mxu0 0.0
        %837 = vmatpush.msra.mxu0 0.0
        %838 = vmatpush.msra.mxu0 0.0
        %839 = vmatpush.msra.mxu0 0.0
        %840 = vmatpush.msra.mxu0 0.0
        %841 = vmatpush.msra.mxu0 0.0
        %842 = vmatpush.msra.mxu0 0.0
        %843 = vmatpush.msra.mxu0 0.0
        %844 = vmatpush.msra.mxu0 0.0
        %845 = vmatpush.msra.mxu0 0.0
        %846 = vmatpush.msra.mxu0 0.0
        %847 = vmatpush.msra.mxu0 0.0
        %848 = vmatpush.msra.mxu0 0.0
        %849 = vmatpush.msra.mxu0 0.0
        %850 = vmatpush.msra.mxu0 %v831
        %851 = vmatmul.f32.gmra.mxu0 %v829
        %v852 = vpop.f32.mrf.mxu0
        %v853 = vadd.f32 0.0, %v852
        %854 = vdwg.mxu0
        %855 = vmatpush.msra.mxu0 0.0
        %856 = vmatpush.msra.mxu0 0.0
        %857 = vmatpush.msra.mxu0 0.0
        %858 = vmatpush.msra.mxu0 0.0
        %859 = vmatpush.msra.mxu0 0.0
        %860 = vmatpush.msra.mxu0 0.0
        %861 = vmatpush.msra.mxu0 0.0
        %862 = vmatpush.msra.mxu0 0.0
        %863 = vmatpush.msra.mxu0 0.0
        %864 = vmatpush.msra.mxu0 0.0
        %865 = vmatpush.msra.mxu0 0.0
        %866 = vmatpush.msra.mxu0 0.0
        %867 = vmatpush.msra.mxu0 0.0
        %868 = vmatpush.msra.mxu0 0.0
        %869 = vmatpush.msra.mxu0 0.0
        %870 = vmatpush.msra.mxu0 %v833
        %871 = vmatmul.f32.gmra.mxu0 %v829
        %v872 = vpop.f32.mrf.mxu0
        %v873 = vadd.f32 0.0, %v872
        %874 = vdwg.mxu0
        %v875 = vadd.f32 %v805, %v853
        %v876 = vadd.f32 %v806, %v873
        %v877 = vld [vmem:[%s262] sm:$0xff]
        %v878 = vld [vmem:[%s262 + $0x8] sm:$0xf]
        %881 = vst [vmem:[#allocation1] ss:$2 sm:$0xff] %v877
        %s882 = scalar_lea.vmem [#allocation1], 16
        %883 = vst [vmem:[%s882] ss:$2 sm:$0xff] %v878
        %v884 = vld.sshfl [vmem:[#allocation1] sm:$0xff pattern:$0x75316420]
        %v885 = vld.sshfl [vmem:[#allocation1 + $0x8] sm:$0xff pattern:$0x75316420]
        %v886 = vld.sshfl [vmem:[#allocation1 + $0x10] sm:$0xff pattern:$0x75316420]
        %887 = vrot.lane.b32.xlu0 %v884, 94
        %v888 = vpop.permute.xlu0 %887
        %889 = vrot.lane.b32.xlu0 %v885, 94
        %v890 = vpop.permute.xlu0 %889
        %891 = vrot.lane.b32.xlu0 %v886, 94
        %v892 = vpop.permute.xlu0 %891
        %vm893 = vcmask 769024
        %v894 = vsel %vm893, %v888, %v890
        %v895 = vsel %vm893, %v890, %v892
        %v898 = vsel %vm433, %v894, 0.0
        %v899 = vsel %vm434, %v895, 0.0
        %s900 = scalar_lea.vmem %s1, 64
        %v901 = vld [vmem:[%s900] sm:$0xff]
        %v903 = vsel %vm331, %v901, 0
        %v906 = vsel %vm335, %v898, 0
        %v909 = vsel %vm335, %v899, 0
        %911 = vmatpush.msra.mxu0 0.0
        %912 = vmatpush.msra.mxu0 0.0
        %913 = vmatpush.msra.mxu0 0.0
        %914 = vmatpush.msra.mxu0 0.0
        %915 = vmatpush.msra.mxu0 0.0
        %916 = vmatpush.msra.mxu0 0.0
        %917 = vmatpush.msra.mxu0 0.0
        %918 = vmatpush.msra.mxu0 0.0
        %919 = vmatpush.msra.mxu0 0.0
        %920 = vmatpush.msra.mxu0 0.0
        %921 = vmatpush.msra.mxu0 0.0
        %922 = vmatpush.msra.mxu0 0.0
        %923 = vmatpush.msra.mxu0 0.0
        %924 = vmatpush.msra.mxu0 0.0
        %925 = vmatpush.msra.mxu0 0.0
        %926 = vmatpush.msra.mxu0 %v906
        %927 = vmatmul.f32.gmra.mxu0 %v903
        %v928 = vpop.f32.mrf.mxu0
        %v929 = vadd.f32 0.0, %v928
        %930 = vdwg.mxu0
        %931 = vmatpush.msra.mxu0 0.0
        %932 = vmatpush.msra.mxu0 0.0
        %933 = vmatpush.msra.mxu0 0.0
        %934 = vmatpush.msra.mxu0 0.0
        %935 = vmatpush.msra.mxu0 0.0
        %936 = vmatpush.msra.mxu0 0.0
        %937 = vmatpush.msra.mxu0 0.0
        %938 = vmatpush.msra.mxu0 0.0
        %939 = vmatpush.msra.mxu0 0.0
        %940 = vmatpush.msra.mxu0 0.0
        %941 = vmatpush.msra.mxu0 0.0
        %942 = vmatpush.msra.mxu0 0.0
        %943 = vmatpush.msra.mxu0 0.0
        %944 = vmatpush.msra.mxu0 0.0
        %945 = vmatpush.msra.mxu0 0.0
        %946 = vmatpush.msra.mxu0 %v909
        %947 = vmatmul.f32.gmra.mxu0 %v903
        %v948 = vpop.f32.mrf.mxu0
        %v949 = vadd.f32 0.0, %v948
        %950 = vdwg.mxu0
        %v951 = vadd.f32 %v875, %v929
        %v952 = vadd.f32 %v876, %v949
        %v953 = vld [vmem:[%s2] sm:$0xff]
        %955 = vset.pattern.permute.xlu0 0
        %956 = vperm.xlu0 %955, %v953
        %v957 = vpop.permute.xlu0 %956
        %v959 = vadd.f32 %v951, %v957
        %v960 = vadd.f32 %v952, %v957
        %v961 = vmax.f32 %v959, 0.0
        %v962 = vmax.f32 %v960, 0.0
        %963 = vst [vmem:[%s250] sm:$0xff] %v961
        %964 = vst [vmem:[%s250 + $0x8] sm:$0xff] %v962
        %v965 = vsel %vm294, 1, 0
        %v966 = vsel %vm295, 1, 0
        %vm967 = vcmp.eq.s32.totalorder %v965, 1
        %vm968 = vcmp.eq.s32.totalorder %v966, 1
        %v969 = vsel %vm967, %v961, 0.0
        %v970 = vsel %vm968, %v962, 0.0
        %v971 = vadd.f32 %v969, %v970
        %972 = vadd.xlane.f32.xlu0 %v971
        %v973 = vpop.xlane.xlu0 %972
        %v974 = vld [vmem:[%s3] sm:$0xff]
        %v975 = vmul.f32 %v973, %v974
        %vm976 = vcmask 7168
        %v977 = vsel %vm976, %v975, 0.0
        %v978 = vrot.slane %v977, 4
        %v979 = vadd.f32 %v977, %v978
        %v980 = vrot.slane %v979, 2
        %v981 = vadd.f32 %v979, %v980
        %v982 = vrot.slane %v981, 1
        %v983 = vadd.f32 %v981, %v982
        %v984 = vmul.f32 %v983, 0.00390625
        %v985 = vld [vmem:[#allocation2] sm:$0x1]
        %v986 = vadd.f32 %v984, %v985
        %s988 = vtos %v986
        %v989 = vstv %s988
        %991 = vst [vmem:[%s257] sm:$0xff] %v989
        %s992 = sand.u32 %s144, 1
        %s993 = scalar_lea.sflag [#allocation4], %s992
        %s994 = sand.u32 %s144, 1
        %s995 = smul.addr %s994, 16
        %s996 = scalar_lea.vmem [#allocation3], %s995
        %s997 = sand.u32 %s170, 1
        %s998 = scalar_lea.sflag [#allocation6], %s997
        %s999 = sand.u32 %s170, 1
        %s1000 = smul.addr %s999, 8
        %s1001 = scalar_lea.vmem [#allocation5], %s1000
        // Predicated region
        $region41: #{tpu_custom_call.1} parent=39 // pred_check
          %p1002 = pneg %p154
        $region42: #{tpu_custom_call.1} parent=39 // pred_check_branch
          %1004 = sbr.rel (%p1002) target = $region44
        $region43: #{tpu_custom_call.1} parent=39 // pred_region
          %1006 = vsyncadd %s993, 0
          %s1007 = smul.addr %s26, 2
          %s1008 = smul.addr %s1007, 8
          %s1009 = scalar_lea.hbm %s5, %s1008
          %s1011 = sshll.u32 %s996, 4
          %s1012 = int_to_ptr.vmem [resolvable:$true] %s1011
          %s1013 = sshll.u32 %s1009, 4
          %s1014 = int_to_ptr.hbm [resolvable:$true] %s1013
          %1016 = dma.vmem_to_hbm [thread:$0]  %s1012, 256, %s1014, %s993
        $region44: #{tpu_custom_call.1} parent=39 // pred_fallthru
          _
        // Predicated region
        $region45: #{tpu_custom_call.1} parent=39 // pred_check
          %p1017 = pneg %p180
        $region46: #{tpu_custom_call.1} parent=39 // pred_check_branch
          %1019 = sbr.rel (%p1017) target = $region48
        $region47: #{tpu_custom_call.1} parent=39 // pred_region
          %1021 = vsyncadd %s998, 0
          %s1022 = smul.addr %s26, 8
          %s1023 = scalar_lea.hbm %s6, %s1022
          %s1025 = sshll.u32 %s1001, 4
          %s1026 = int_to_ptr.vmem [resolvable:$true] %s1025
          %s1027 = sshll.u32 %s1023, 4
          %s1028 = int_to_ptr.hbm [resolvable:$true] %s1027
          %1030 = dma.vmem_to_hbm [thread:$0]  %s1026, 128, %s1028, %s998
        $region48: #{tpu_custom_call.1} parent=39 // pred_fallthru
          _
      $region40: #{tpu_custom_call.1} parent=5 // pred_fallthru
        _
      %p1031 = scmp.le.s32.totalorder 2, %s21
      // Predicated region
      $region49: #{tpu_custom_call.1} parent=5 // pred_check
        %p1032 = pneg %p1031
      $region50: #{tpu_custom_call.1} parent=5 // pred_check_branch
        %1034 = sbr.rel (%p1032) target = $region52
      $region51: #{tpu_custom_call.1} parent=5 // pred_region
        %s1035 = ssub.s32 %s21, 2
        // Predicated region
        $region53: #{tpu_custom_call.1} parent=51 // pred_check
          %p1036 = pneg %p160
        $region54: #{tpu_custom_call.1} parent=51 // pred_check_branch
          %1038 = sbr.rel (%p1036) target = $region56
        $region55: #{tpu_custom_call.1} parent=51 // pred_region
          %s1039 = sand.u32 %s145, 1
          %s1040 = scalar_lea.sflag [#allocation4], %s1039
          %s1041 = sand.u32 %s145, 1
          %s1042 = smul.addr %s1041, 16
          %s1043 = scalar_lea.vmem [#allocation3], %s1042
          %1045 = dma.done %s1040, 256
        $region56: #{tpu_custom_call.1} parent=51 // pred_fallthru
          _
        // Predicated region
        $region57: #{tpu_custom_call.1} parent=51 // pred_check
          %p1046 = pneg %p186
        $region58: #{tpu_custom_call.1} parent=51 // pred_check_branch
          %1048 = sbr.rel (%p1046) target = $region60
        $region59: #{tpu_custom_call.1} parent=51 // pred_region
          %s1049 = sand.u32 %s171, 1
          %s1050 = scalar_lea.sflag [#allocation6], %s1049
          %s1051 = sand.u32 %s171, 1
          %s1052 = smul.addr %s1051, 8
          %s1053 = scalar_lea.vmem [#allocation5], %s1052
          %1055 = dma.done %s1050, 128
        $region60: #{tpu_custom_call.1} parent=51 // pred_fallthru
          _
      $region52: #{tpu_custom_call.1} parent=5 // pred_fallthru
        _
    $region6: #{tpu_custom_call.1} parent=1 // loop_footer
      %s25 = sadd.s32 1, %s21
    $region7: #{tpu_custom_call.1} parent=1 // loop_footer_branch
      %20 = sbr.rel target = $region3
    $region8: #{tpu_custom_call.1} parent=1 // loop_exit
      _
    %1056 = vsyncpa [#allocation4], 1
    %s1057 = scalar_lea.sflag [#allocation4], 1
    %1058 = vsyncpa %s1057, 1
    %1059 = vsyncpa [#allocation6], 1
    %s1060 = scalar_lea.sflag [#allocation6], 1
    %1061 = vsyncpa %s1060, 1

</llo_original>
